<compile_context>
chip_gen: v5e
topology: v5e:2x2
jax: 0.10.0
libtpu: 0.0.40
codegen_flags: <defaults>
</compile_context>

<pallas_src>
import functools
import math

import numpy as np
import jax
import jax.numpy as jnp
from jax import lax
from jax.experimental import pallas as pl
from jax.experimental.pallas import tpu as pltpu

# ---------------- config (matches the PyTorch module instantiation) ----------
N_LAYER = 2
N_HEAD = 4
N_EMBD = 64
BLOCK_SIZE = 16
BIDIRECTIONAL = False          # causal attention
DROPOUT = 0.0                  # identity
BATCH = 2
SEQ = 8

HEAD_DIM = N_EMBD // N_HEAD            # 16
ROT_NDIMS = HEAD_DIM // 2              # 8 rotary dims per head
EPS = 1e-5
NEG_BIG = -1e30


# --------------------------- in-kernel helpers ------------------------------
def _layernorm(u, w, b):
    mu = jnp.mean(u, axis=-1, keepdims=True)
    var = jnp.mean(jnp.square(u - mu), axis=-1, keepdims=True)
    return (u - mu) * lax.rsqrt(var + EPS) * w + b


def _mmb(a, b):
    # (M,K) @ (K,N): bf16 operands, f32 accumulation on the MXU (single pass).
    return lax.dot_general(a.astype(jnp.bfloat16), b.astype(jnp.bfloat16),
                           (((1,), (0,)), ((), ())),
                           preferred_element_type=jnp.float32)


def _mmb_nt(a, b):
    # (M,K) @ (N,K)^T -> (M,N), contraction on last dims (no explicit transpose).
    return lax.dot_general(a.astype(jnp.bfloat16), b.astype(jnp.bfloat16),
                           (((1,), (1,)), ((), ())),
                           preferred_element_type=jnp.float32)


def _gelu_exact(x):
    # torch.nn.GELU() default (erf-based, exact)
    return 0.5 * x * (1.0 + lax.erf(x * (1.0 / math.sqrt(2.0))))


# ------------------- pltpu.roll shift-convention probe -----------------------
def _roll_matches_numpy():
    """True iff pltpu.roll(x, s)[i] == x[i - s]  (np.roll semantics)."""
    def k(x_ref, o_ref):
        o_ref[...] = pltpu.roll(x_ref[...], shift=1, axis=1)
    x = jnp.tile(jnp.arange(128, dtype=jnp.float32)[None, :], (8, 1))
    y = pl.pallas_call(k, out_shape=jax.ShapeDtypeStruct((8, 128), jnp.float32))(x)
    return bool(np.asarray(y)[0, 0] == 127.0)


# ------------------------ host-precomputed constants -------------------------
def make_constants(B, T, C, n_head, causal, base=10000.0):
    """rope tables (sign/halves folded in), additive attention bias, head mask."""
    BT = B * T
    hd = C // n_head
    rot = hd // 2
    half = rot // 2
    W = 2 * C
    HBT = n_head * BT

    # rotary cos/sin exactly as torch RotaryEmbedding(dim=rot)
    inv_freq = 1.0 / (base ** (np.arange(0, rot, 2, dtype=np.float32) / rot))
    t = np.arange(T, dtype=np.float32)
    freqs = np.einsum("i,j->ij", t, inv_freq)                   # (T, rot//2)
    emb = np.concatenate([freqs, freqs], axis=-1)               # (T, rot)
    cos = np.cos(emb).astype(np.float32)
    sin = np.sin(emb).astype(np.float32)

    # per-head lane patterns (rot rotary lanes, hd-rot pass-through lanes)
    cos_h = np.ones((T, hd), np.float32);   cos_h[:, :rot] = cos
    sinp_h = np.zeros((T, hd), np.float32); sinp_h[:, half:rot] = sin[:, half:]   # partner at -half
    sinm_h = np.zeros((T, hd), np.float32); sinm_h[:, :half] = -sin[:, :half]     # partner at +half

    def slab(h):                                  # (T,hd) -> (BT, 2C) over Q|K regions and batch
        return np.tile(np.tile(h, (1, 2 * n_head)), (B, 1))

    rope = np.stack([slab(cos_h), slab(sinp_h), slab(sinm_h)], 0)   # (3, BT, 2C)

    # additive attention bias: block-diagonal over batch, causal within batch,
    # tiled over head segments of the fused (BT, n_head*BT) score matrix.
    tq = np.arange(T)
    base_m = np.zeros((T, T), np.float32)
    if causal:
        base_m = np.where(tq[None, :] <= tq[:, None], 0.0, NEG_BIG).astype(np.float32)
    blk = np.full((BT, BT), NEG_BIG, np.float32)
    for b in range(B):
        blk[b * T:(b + 1) * T, b * T:(b + 1) * T] = base_m
    attn_bias = np.tile(blk, (1, n_head))                           # (BT, HBT)

    # per-head lane mask: row h*BT+k selects only head h's Q-region lanes.
    qmask = np.zeros((HBT, W), np.float32)
    for h in range(n_head):
        qmask[h * BT:(h + 1) * BT, h * hd:(h + 1) * hd] = 1.0

    consts = dict(rope=jnp.asarray(rope),
                  attn_bias=jnp.asarray(attn_bias),
                  qmask=jnp.asarray(qmask))
    return consts, (jnp.asarray(cos), jnp.asarray(sin))             # + reference tables


# ------------------------------ fused Pallas kernel --------------------------
def make_decoder_kernel(B, T, C, n_head, n_layer, roll_np):
    BT = B * T
    hd = C // n_head
    rot = hd // 2
    half = rot // 2
    W = 2 * C                                   # roped Q|K slab lane width
    # shifts so that r_plus[i] = u[i-half], r_minus[i] = u[i+half] regardless of
    # the pltpu.roll convention detected by the probe.
    if roll_np:
        sh_plus, sh_minus = half, W - half
    else:
        sh_plus, sh_minus = W - half, half

    def kernel(x_ref, rope_ref, bias_ref, qmask_ref,
               wqkv_ref, bqkv_ref, wproj_ref, wfc_ref, bfc_ref, wfp_ref,
               vec_ref, out_ref):
        x = x_ref[...]                           # (BT, C) f32 residual stream
        cos_t = rope_ref[0]                      # (BT, 2C)
        sinp_t = rope_ref[1]
        sinm_t = rope_ref[2]
        bias = bias_ref[...]                     # (BT, n_head*BT) additive mask
        qmask = qmask_ref[...]                   # (n_head*BT, 2C) 0/1
        vmask = qmask[:, :C]                     # (n_head*BT, C)  0/1

        def vrow(i):
            return vec_ref[i]                    # (1, C)

        for l in range(n_layer):                 # statically unrolled
            base = 6 * l
            # ---------------- attention branch ----------------
            xn = _layernorm(x, vrow(base + 0), vrow(base + 1))
            qkv = _mmb(xn, wqkv_ref[l]) + bqkv_ref[l]          # (BT, 3C) f32
            qk = qkv[:, :W]                                     # (BT, 2C) clean vreg split
            v = qkv[:, W:]                                      # (BT, C)

            # RoPE over the whole Q|K slab; sign + half-selection live in tables.
            qk = (qk * cos_t
                  + pltpu.roll(qk, shift=sh_plus, axis=1) * sinp_t
                  + pltpu.roll(qk, shift=sh_minus, axis=1) * sinm_t)

            # K lanes moved onto Q lane positions (shift = W/2, convention-free),
            # replicated per head along sublanes, masked block-diagonal.
            kq = pltpu.roll(qk, shift=C, axis=1)                # (BT, 2C)
            kexp = jnp.concatenate([kq] * n_head, axis=0) * qmask     # (HBT, 2C)

            # one fused score matmul for all heads (scale pre-folded into wqkv)
            s = _mmb_nt(qk, kexp) + bias                        # (BT, HBT) f32
            # full-row max is a shared constant per softmax group -> exact softmax
            p = jnp.exp(s - jnp.max(s, axis=-1, keepdims=True))

            vexp = jnp.concatenate([v] * n_head, axis=0) * vmask       # (HBT, C)
            y_un = _mmb(p, vexp)                                # (BT, C) unnormalized
            denom = _mmb(p, vmask)                              # per-head sums on head lanes
            y = y_un * pl.reciprocal(denom, approx=True)
            x = x + _mmb(y, wproj_ref[l]) + vrow(base + 2)      # residual 1

            # ---------------- MLP branch ----------------
            xn2 = _layernorm(x, vrow(base + 3), vrow(base + 4))
            h1 = _mmb(xn2, wfc_ref[l]) + bfc_ref[l]
            g = _gelu_exact(h1)
            x = x + _mmb(g, wfp_ref[l]) + vrow(base + 5)        # residual 2

        out_ref[...] = _layernorm(x, vec_ref[6 * n_layer],
                                  vec_ref[6 * n_layer + 1]).astype(out_ref.dtype)

    return kernel


def simplified_decoder_forward(x, packed, *, n_head, n_layer, roll_np):
    B, T, C = x.shape
    kernel = make_decoder_kernel(B, T, C, n_head, n_layer, roll_np)
    x2d = x.reshape(B * T, C)                  # free reshape (leading dims)

    args = (x2d, packed["rope"], packed["attn_bias"], packed["qmask"],
            packed["wqkv"], packed["bqkv"], packed["wproj"],
            packed["wfc"], packed["bfc"], packed["wfp"], packed["vec"])

    out2d = pl.pallas_call(
        kernel,
        out_shape=jax.ShapeDtypeStruct((B * T, C), x.dtype),
        cost_estimate=pl.CostEstimate(flops=4_200_000,
                                      transcendentals=11_000,
                                      bytes_accessed=280_000),
    )(*args)
    return out2d.reshape(B, T, C)


# --------------------------- parameter init & packing ------------------------
def init_params(key, n_layer, n_embd):
    std = 0.02
    cproj_std = 0.02 / math.sqrt(2 * n_layer)      # module's special c_proj init
    C = n_embd
    L = n_layer
    keys = jax.random.split(key, 4 * n_layer)
    wqkv = jnp.stack([std * jax.random.normal(keys[4 * i + 0], (C, 3 * C), jnp.float32)
                      for i in range(L)])
    wproj = jnp.stack([cproj_std * jax.random.normal(keys[4 * i + 1], (C, C), jnp.float32)
                       for i in range(L)])
    wfc = jnp.stack([std * jax.random.normal(keys[4 * i + 2], (C, 4 * C), jnp.float32)
                     for i in range(L)])
    wfp = jnp.stack([cproj_std * jax.random.normal(keys[4 * i + 3], (4 * C, C), jnp.float32)
                     for i in range(L)])
    return dict(
        ln1w=jnp.ones((L, 1, C), jnp.float32), ln1b=jnp.zeros((L, 1, C), jnp.float32),
        wqkv=wqkv, bqkv=jnp.zeros((L, 1, 3 * C), jnp.float32),
        wproj=wproj, bproj=jnp.zeros((L, 1, C), jnp.float32),
        ln2w=jnp.ones((L, 1, C), jnp.float32), ln2b=jnp.zeros((L, 1, C), jnp.float32),
        wfc=wfc, bfc=jnp.zeros((L, 1, 4 * C), jnp.float32),
        wfp=wfp, bfp=jnp.zeros((L, 1, C), jnp.float32),
        lnfw=jnp.ones((1, C), jnp.float32), lnfb=jnp.zeros((1, C), jnp.float32),
    )


def pack_params(params, n_head):
    """Host-side constant folds + operand packing (done once, outside jit)."""
    L, C, _ = params["wqkv"].shape
    hd = C // n_head
    scale = 1.0 / math.sqrt(hd)

    # fold the softmax 1/sqrt(hd) into the Q columns of the qkv projection
    wqkv = np.array(params["wqkv"], dtype=np.float32)
    bqkv = np.array(params["bqkv"], dtype=np.float32)
    wqkv[:, :, :C] *= scale
    bqkv[:, :, :C] *= scale

    # pack all width-C vectors into one slab: per layer
    # [ln1w, ln1b, bproj, ln2w, ln2b, bfp], then [lnfw, lnfb].
    rows = []
    for l in range(L):
        rows += [params["ln1w"][l], params["ln1b"][l], params["bproj"][l],
                 params["ln2w"][l], params["ln2b"][l], params["bfp"][l]]
    rows += [params["lnfw"], params["lnfb"]]
    vec = jnp.stack([jnp.asarray(r, jnp.float32) for r in rows], axis=0)  # (6L+2, 1, C)

    wdt = jnp.bfloat16                         # weights enter the kernel as bf16
    return dict(
        wqkv=jnp.asarray(wqkv, wdt), bqkv=jnp.asarray(bqkv, jnp.float32),
        wproj=params["wproj"].astype(wdt),
        wfc=params["wfc"].astype(wdt), bfc=params["bfc"].astype(jnp.float32),
        wfp=params["wfp"].astype(wdt),
        vec=vec,
    )


# ------------------------------- pure-JAX reference ---------------------------
def reference_forward(x, params, cos_tr, sin_tr, *, n_head, n_layer, causal):
    """Faithful f32 (HIGHEST precision) re-implementation of the torch module."""
    B, T, C = x.shape
    hd = C // n_head
    rot = hd // 2
    HI = lax.Precision.HIGHEST

    def ln(u, w, b):
        mu = u.mean(-1, keepdims=True)
        var = ((u - mu) ** 2).mean(-1, keepdims=True)
        return (u - mu) / jnp.sqrt(var + EPS) * w.reshape(-1) + b.reshape(-1)

    def rotate_half(u):
        u1, u2 = u[..., :u.shape[-1] // 2], u[..., u.shape[-1] // 2:]
        return jnp.concatenate([-u2, u1], axis=-1)

    for l in range(n_layer):
        xn = ln(x, params["ln1w"][l], params["ln1b"][l])
        qkv = jnp.dot(xn, params["wqkv"][l], precision=HI) + params["bqkv"][l]
        q, k, v = jnp.split(qkv, 3, axis=-1)
        q = q.reshape(B, T, n_head, hd).transpose(0, 2, 1, 3)
        k = k.reshape(B, T, n_head, hd).transpose(0, 2, 1, 3)
        v = v.reshape(B, T, n_head, hd).transpose(0, 2, 1, 3)
        q_rot, q_pass = q[..., :rot], q[..., rot:]
        k_rot, k_pass = k[..., :rot], k[..., rot:]
        q_rot = q_rot * cos_tr + rotate_half(q_rot) * sin_tr
        k_rot = k_rot * cos_tr + rotate_half(k_rot) * sin_tr
        q = jnp.concatenate([q_rot, q_pass], -1)
        k = jnp.concatenate([k_rot, k_pass], -1)
        att = jnp.einsum("bhqd,bhkd->bhqk", q, k, precision=HI) / math.sqrt(hd)
        if causal:
            m = jnp.tril(jnp.ones((T, T), bool))
            att = jnp.where(m, att, -jnp.inf)
        att = jax.nn.softmax(att, axis=-1)
        y = jnp.einsum("bhqk,bhkd->bhqd", att, v, precision=HI)
        y = y.transpose(0, 2, 1, 3).reshape(B, T, C)
        x = x + jnp.dot(y, params["wproj"][l], precision=HI) + params["bproj"][l]
        xn2 = ln(x, params["ln2w"][l], params["ln2b"][l])
        h1 = jnp.dot(xn2, params["wfc"][l], precision=HI) + params["bfc"][l]
        g = 0.5 * h1 * (1.0 + lax.erf(h1 / math.sqrt(2.0)))
        x = x + jnp.dot(g, params["wfp"][l], precision=HI) + params["bfp"][l]
    return ln(x, params["lnfw"], params["lnfb"])


# ------------------------------------ main ------------------------------------
if __name__ == "__main__":
    key = jax.random.PRNGKey(0)
    kp, kx = jax.random.split(key)

    params = init_params(kp, N_LAYER, N_EMBD)
    consts, (cos_tr, sin_tr) = make_constants(BATCH, SEQ, N_EMBD, N_HEAD,
                                              causal=not BIDIRECTIONAL)
    packed = {**pack_params(params, N_HEAD), **consts}

    x = jax.random.normal(kx, (BATCH, SEQ, N_EMBD), jnp.float32)

    roll_np = _roll_matches_numpy()            # one tiny probe compile, run once

    fwd = jax.jit(functools.partial(simplified_decoder_forward,
                                    n_head=N_HEAD, n_layer=N_LAYER,
                                    roll_np=roll_np))
    out = jax.block_until_ready(fwd(x, packed))

    ref = jax.block_until_ready(reference_forward(
        x, params, cos_tr, sin_tr,
        n_head=N_HEAD, n_layer=N_LAYER, causal=not BIDIRECTIONAL))

    assert out.shape == (BATCH, SEQ, N_EMBD)
    np.testing.assert_allclose(np.asarray(out), np.asarray(ref), rtol=5e-3, atol=5e-3)
    print("KERNEL_OK")
</pallas_src>

<mosaic_0001>
module attributes {stable_mosaic.version = 11 : i64} {
  func.func @k(%arg0: memref<8x128xf32, #tpu.memory_space<vmem>>, %arg1: memref<8x128xf32, #tpu.memory_space<vmem>>) attributes {dimension_semantics = [], scalar_prefetch = 0 : i64, scratch_operands = 0 : i64, tpu.core_type = #tpu.core_type<tc>} {
    %c0 = arith.constant 0 : index
    %c0_0 = arith.constant 0 : index
    %0 = vector.load %arg0[%c0, %c0_0] : memref<8x128xf32, #tpu.memory_space<vmem>>, vector<8x128xf32>
    %c1_i32 = arith.constant 1 : i32
    %1 = tpu.dynamic_rotate %0 by %c1_i32 dim 1 : vector<8x128xf32>, i32 -> vector<8x128xf32>
    %c0_1 = arith.constant 0 : index
    %c0_2 = arith.constant 0 : index
    %2 = vector.load %arg1[%c0_1, %c0_2] : memref<8x128xf32, #tpu.memory_space<vmem>>, vector<8x128xf32>
    tpu.vector_store %arg1[%c0_1, %c0_2], %1 {strides = array<i32>} : memref<8x128xf32, #tpu.memory_space<vmem>>, vector<8x128xf32>,
    return
  }
}

</mosaic_0001>

<llo_original>
// kernel: tpu_custom_call.1
$region0: #{tpu_custom_call.1}
  #allocation0 [shape = 'u32[]', space=smem, size = 0x4, offset = 0x4, fixed_abs, tag = 'smem constant byte address 0x4 - core index']
  #allocation1 [shape = 'u32[72,128]{1,0:T(1,128)}', space=vmem, size = 0x9000, scoped, tag = 'internal scratch']
  %s0 = inlined_call_operand.hbm [shape: f32[8,128], index: 0, kind: input, shape index: {}]
  %s1 = inlined_call_operand.hbm [shape: f32[8,128], index: 1, kind: output, shape index: {}]
  %s2 = sld [smem:[#allocation0]]
  $region18: #{tpu_custom_call.1} parent=0
    _
  %s4 = ssub.s32 1, %s2
  %s5 = scalar_select 0, %s4, %s2
  $region1: #{tpu_custom_call.1} parent=0
    #allocation2 [shape = 'u8[4096]{0}', space=vmem, size = 0x1000, scoped, tag = 'input window, operand 0, single buffered']
    #allocation3 [shape = 's32[1]{0}', space=sflag, size = 0x4, scoped, tag = 'scoped memory for tpu_custom_call.1']
    #allocation4 [shape = 's32[1]{0}', space=sflag, size = 0x4, scoped, tag = 'scoped memory for tpu_custom_call.1']
    #allocation5 [shape = 'u8[4096]{0}', space=vmem, size = 0x1000, scoped, tag = 'output window, operand 0, single buffered']
    %6 = vsyncpa [#allocation3], 0
    %7 = vsyncpa [#allocation4], 0
    // Predicated region
    $region2: #{tpu_custom_call.1} parent=1 // pred_check
      _
    $region3: #{tpu_custom_call.1} parent=1 // pred_check_branch
      %9 = sbr.rel (0) target = $region5
    $region4: #{tpu_custom_call.1} parent=1 // pred_region
      %11 = vsyncadd [#allocation3], 0
      %s13 = sshll.u32 %s0, 4
      %s14 = int_to_ptr.hbm [resolvable:$true] %s13
      %s15 = sshll.u32 [#allocation2], 4
      %s16 = int_to_ptr.vmem [resolvable:$true] %s15
      %18 = dma.hbm_to_vmem [thread:$0]  %s14, 128, %s16, [#allocation3]
    $region5: #{tpu_custom_call.1} parent=1 // pred_fallthru
      _
    // Predicated region
    $region6: #{tpu_custom_call.1} parent=1 // pred_check
      _
    $region7: #{tpu_custom_call.1} parent=1 // pred_check_branch
      %20 = sbr.rel (0) target = $region9
    $region8: #{tpu_custom_call.1} parent=1 // pred_region
      %22 = dma.done [#allocation3], 128
    $region9: #{tpu_custom_call.1} parent=1 // pred_fallthru
      _
    %v23 = vld [vmem:[#allocation2] sm:$0xff]
    %24 = vrot.lane.b32.xlu0 %v23, 1
    %v25 = vpop.permute.xlu0 %24
    %26 = vst [vmem:[#allocation5] sm:$0xff] %v25
    // Predicated region
    $region10: #{tpu_custom_call.1} parent=1 // pred_check
      _
    $region11: #{tpu_custom_call.1} parent=1 // pred_check_branch
      %28 = sbr.rel (0) target = $region13
    $region12: #{tpu_custom_call.1} parent=1 // pred_region
      %30 = vsyncadd [#allocation4], 0
      %s32 = sshll.u32 [#allocation5], 4
      %s33 = int_to_ptr.vmem [resolvable:$true] %s32
      %s34 = sshll.u32 %s1, 4
      %s35 = int_to_ptr.hbm [resolvable:$true] %s34
      %37 = dma.vmem_to_hbm [thread:$0]  %s33, 128, %s35, [#allocation4]
    $region13: #{tpu_custom_call.1} parent=1 // pred_fallthru
      _
    // Predicated region
    $region14: #{tpu_custom_call.1} parent=1 // pred_check
      _
    $region15: #{tpu_custom_call.1} parent=1 // pred_check_branch
      %39 = sbr.rel (0) target = $region17
    $region16: #{tpu_custom_call.1} parent=1 // pred_region
      %41 = dma.done [#allocation4], 128
    $region17: #{tpu_custom_call.1} parent=1 // pred_fallthru
      _
    %42 = vsyncpa [#allocation3], 1
    %43 = vsyncpa [#allocation4], 1

</llo_original>
